<compile_context>
chip_gen: v5e
topology: v5e:2x2
jax: 0.10.0
libtpu: 0.0.40
codegen_flags: <defaults>
</compile_context>

<pallas_src>
import jax
import jax.numpy as jnp
from jax.experimental import pallas as pl
from jax.experimental.pallas import tpu as pltpu


def _round_up(v, m):
    return ((v + m - 1) // m) * m


def _make_kernel(D_total, td, num_d, needs_mask):
    def kernel(x_ref, w_ref, b_ref, o_ref, acc_ref):
        # x_ref : (tb, td)  native-dtype VMEM tile of x (batch on sublanes)
        # w_ref : (1, td)   f32 weight row (sublane-broadcast)
        # b_ref : (1,)      f32 bias scalar in SMEM
        # o_ref : (tb, 1)   f32 output column
        # acc_ref: (tb, 1)  f32 VMEM accumulator (only used when D is tiled)
        k = pl.program_id(1)

        x = x_ref[...].astype(jnp.float32)      # in-register cast (no-op for f32)
        w = w_ref[...]                          # already f32
        prod = x * w                            # VPU multiply, (tb, td)

        if needs_mask:
            # Ragged last D tile: zero out-of-range lanes so they don't
            # contaminate the reduction.
            lane = jax.lax.broadcasted_iota(jnp.int32, prod.shape, 1)
            prod = jnp.where(k * td + lane < D_total, prod, 0.0)

        partial = jnp.sum(prod, axis=-1, keepdims=True)   # XLU lane reduce -> (tb, 1)

        if num_d == 1:
            o_ref[...] = jax.nn.sigmoid(partial + b_ref[0])   # EUP exp
        else:
            @pl.when(k == 0)
            def _():
                acc_ref[...] = jnp.zeros_like(acc_ref)

            acc_ref[...] += partial

            @pl.when(k == num_d - 1)
            def _():
                o_ref[...] = jax.nn.sigmoid(acc_ref[...] + b_ref[0])

    return kernel


@jax.jit
def logistic_regression(x, w, b):
    """x: (B, D), w: (1, D) as in nn.Linear, b: (1,). Returns sigmoid(x @ w.T + b), shape (B, 1)."""
    B, D = x.shape
    itemsize = jnp.dtype(x.dtype).itemsize
    align = 16 if itemsize == 2 else 8          # bf16 min sublane tile is 16

    # --- Generation-aware VMEM budget ---------------------------------------
    try:
        vmem_cap = pltpu.get_tpu_info().vmem_capacity_bytes   # 128 MiB v5e/v6e, 64 MiB v7x
    except Exception:  # pragma: no cover - conservative fallback
        vmem_cap = 64 << 20
    vmem_limit = min(max(vmem_cap // 2, 32 << 20), 48 << 20)
    x_buf_budget = vmem_limit // 3              # per x buffer: double-buffer + headroom

    # --- D (feature / reduction) tiling --------------------------------------
    if D * itemsize * align <= x_buf_budget:
        td, num_d = D, 1                        # whole feature dim in one block
    else:
        td = max(128, (x_buf_budget // (align * itemsize)) // 128 * 128)
        td = min(td, _round_up(D, 128))
        num_d = pl.cdiv(D, td)
    needs_mask = (num_d > 1) and (D % td != 0)

    # --- B (batch) tiling -----------------------------------------------------
    target_tile_bytes = 4 << 20                 # amortize ~0.35 us/step grid overhead
    row_bytes = td * itemsize
    max_tb = max(align, (min(target_tile_bytes, x_buf_budget) // row_bytes) // align * align)
    tb = min(_round_up(B, align), max_tb)
    if tb >= B:
        tb = B                                  # single block == full dim is always legal
    num_b = pl.cdiv(B, tb)
    # v7x megacore: make sure both TensorCores get batch tiles when B allows.
    if num_b == 1 and B >= 2 * align:
        tb = _round_up(pl.cdiv(B, 2), align)
        num_b = pl.cdiv(B, tb)

    # --- Small operands -------------------------------------------------------
    w_row = w.astype(jnp.float32).reshape(1, D)          # (1, D) row, sublane broadcast
    b_s = b.astype(jnp.float32).reshape((1,))            # (1,) scalar in SMEM

    cost = pl.CostEstimate(
        flops=2 * B * D,
        transcendentals=B,
        bytes_accessed=B * D * itemsize + 4 * (D + 1 + B),
    )

    kernel = _make_kernel(D, td, num_d, needs_mask)

    out = pl.pallas_call(
        kernel,
        out_shape=jax.ShapeDtypeStruct((B, 1), jnp.float32),
        grid=(num_b, num_d),
        in_specs=[
            # TODO(synk): sweep pipeline_mode=pl.Buffered(3) here if a profile
            # shows exposed DMA once tiles are large.
            pl.BlockSpec((tb, td), lambda i, k: (i, k)),            # x tile, native dtype
            pl.BlockSpec((1, td), lambda i, k: (0, k)),             # weight row (batch-invariant)
            pl.BlockSpec(memory_space=pltpu.MemorySpace.SMEM),      # bias scalar
        ],
        out_specs=pl.BlockSpec((tb, 1), lambda i, k: (i, 0)),
        scratch_shapes=[pltpu.VMEM((tb, 1), jnp.float32)],          # f32 accumulator
        compiler_params=pltpu.CompilerParams(
            dimension_semantics=("parallel", "arbitrary"),
            vmem_limit_bytes=vmem_limit,
        ),
        cost_estimate=cost,
    )(x, w_row, b_s)

    return out


if __name__ == "__main__":
    key = jax.random.PRNGKey(0)
    kx, kw, kb = jax.random.split(key, 3)

    B, D = 8, 32  # batch=8, inp_param=32
    x = jax.random.normal(kx, (B, D), dtype=jnp.float32)

    # Deterministic parameter init mimicking nn.Linear(inp_param, 1):
    # weight (1, D), bias (1,), uniform(-1/sqrt(D), 1/sqrt(D)).
    bound = 1.0 / (D ** 0.5)
    w = jax.random.uniform(kw, (1, D), minval=-bound, maxval=bound, dtype=jnp.float32)
    b = jax.random.uniform(kb, (1,), minval=-bound, maxval=bound, dtype=jnp.float32)

    out = logistic_regression(x, w, b)
    jax.block_until_ready(out)

    # Reference check in plain JAX.
    ref = jax.nn.sigmoid(x @ w.T + b)
    assert out.shape == (B, 1)
    assert jnp.allclose(out, ref, atol=1e-5), "mismatch vs reference"

    print("KERNEL_OK")
</pallas_src>

<mosaic_0001>
module attributes {stable_mosaic.version = 11 : i64} {
  func.func @kernel(%arg0: i32, %arg1: i32, %arg2: memref<8x32xf32, #tpu.memory_space<vmem>>, %arg3: memref<1x32xf32, #tpu.memory_space<vmem>>, %arg4: memref<1xf32, #tpu.memory_space<smem>>, %arg5: memref<8x1xf32, #tpu.memory_space<vmem>>, %arg6: memref<8x1xf32, #tpu.memory_space<vmem>>) attributes {dimension_semantics = [#tpu.dimension_semantics<parallel>, #tpu.dimension_semantics<arbitrary>], iteration_bounds = array<i64: 1, 1>, scalar_prefetch = 0 : i64, scratch_operands = 1 : i64, tpu.core_type = #tpu.core_type<tc>, window_params = [{transform_indices = @transform_0, window_bounds = array<i64: 8, 32>}, {transform_indices = @transform_1, window_bounds = array<i64: 1, 32>}, {transform_indices = @transform_2, window_bounds = array<i64: 1>}, {transform_indices = @transform_3, window_bounds = array<i64: 8, 1>}]} {
    %c0 = arith.constant 0 : index
    %c0_0 = arith.constant 0 : index
    %0 = vector.load %arg2[%c0, %c0_0] : memref<8x32xf32, #tpu.memory_space<vmem>>, vector<8x32xf32>
    %c0_1 = arith.constant 0 : index
    %c0_2 = arith.constant 0 : index
    %1 = vector.load %arg3[%c0_1, %c0_2] : memref<1x32xf32, #tpu.memory_space<vmem>>, vector<1x32xf32>
    %2 = vector.broadcast %1 : vector<1x32xf32> to vector<8x32xf32>
    %3 = arith.mulf %0, %2 : vector<8x32xf32>
    %cst = arith.constant dense<0.000000e+00> : vector<8xf32>
    %4 = vector.multi_reduction <add>, %3, %cst [1] : vector<8x32xf32> to vector<8xf32>
    %5 = vector.shape_cast %4 : vector<8xf32> to vector<8x1xf32>
    %c0_3 = arith.constant 0 : index
    %6 = memref.load %arg4[%c0_3] : memref<1xf32, #tpu.memory_space<smem>>
    %7 = vector.broadcast %6 : f32 to vector<8x1xf32>
    %8 = arith.addf %5, %7 : vector<8x1xf32>
    %9 = arith.negf %8 : vector<8x1xf32>
    %10 = math.exp %9 : vector<8x1xf32>
    %cst_4 = arith.constant 1.000000e+00 : f32
    %11 = vector.broadcast %cst_4 : f32 to vector<8x1xf32>
    %12 = arith.addf %11, %10 : vector<8x1xf32>
    %13 = arith.divf %11, %12 : vector<8x1xf32>
    %c0_5 = arith.constant 0 : index
    %c0_6 = arith.constant 0 : index
    %14 = vector.load %arg5[%c0_5, %c0_6] : memref<8x1xf32, #tpu.memory_space<vmem>>, vector<8x1xf32>
    tpu.vector_store %arg5[%c0_5, %c0_6], %13 {strides = array<i32>} : memref<8x1xf32, #tpu.memory_space<vmem>>, vector<8x1xf32>,
    return
  }
  func.func @transform_0(%arg0: i32, %arg1: i32) -> (i32, i32) {
    %c0_i32 = arith.constant 0 : i32
    return %arg0, %arg1 : i32, i32
  }
  func.func @transform_1(%arg0: i32, %arg1: i32) -> (i32, i32) {
    %c0_i32 = arith.constant 0 : i32
    %c0_i32_0 = arith.constant 0 : i32
    return %c0_i32, %arg1 : i32, i32
  }
  func.func @transform_2(%arg0: i32, %arg1: i32) -> i32 {
    %c0_i32 = arith.constant 0 : i32
    %c0_i32_0 = arith.constant 0 : i32
    return %c0_i32 : i32
  }
  func.func @transform_3(%arg0: i32, %arg1: i32) -> (i32, i32) {
    %c0_i32 = arith.constant 0 : i32
    %c0_i32_0 = arith.constant 0 : i32
    return %arg0, %c0_i32 : i32, i32
  }
}

</mosaic_0001>

<llo_original>
// kernel: logistic_regression.1
$region0: #{logistic_regression.1}
  #allocation0 [shape = 'u32[]', space=smem, size = 0x4, offset = 0x4, fixed_abs, tag = 'smem constant byte address 0x4 - core index']
  #allocation1 [shape = 'u32[72,128]{1,0:T(1,128)}', space=vmem, size = 0x9000, scoped, tag = 'internal scratch']
  #allocation2 [shape = 'f32[8,1]{1,0:T(8,128)}', space=vmem, size = 0x1000, scoped, tag = 'scratch operand']
  #allocation3 [shape = 'f32[1]{0:T(128)S(6)}', space=smem, size = 0x200, scoped, tag = 'scoped memory for logistic_regression.1']
  %s0 = inlined_call_operand.hbm [shape: f32[8,32], index: 0, kind: input, shape index: {}]
  %s1 = inlined_call_operand.vmem [shape: f32[1,32], index: 1, kind: input, shape index: {}]
  %s2 = inlined_call_operand.<no memory space> [shape: f32[1], index: 2, kind: input, shape index: {}]
  %s3 = inlined_call_operand.vmem [shape: f32[8,1], index: 3, kind: output, shape index: {}]
  %s4 = sld [smem:[#allocation0]]
  $region26: #{logistic_regression.1} parent=0
    _
  %s6 = ssub.s32 1, %s4
  %s7 = scalar_select 0, %s6, %s4
  %8 = sst [smem:[#allocation3]] %s2
  $region1: #{logistic_regression.1} parent=0
    #allocation4 [shape = 'u8[4096]{0}', space=vmem, size = 0x1000, scoped, tag = 'input window, operand 0, single buffered']
    #allocation5 [shape = 's32[1]{0}', space=sflag, size = 0x4, scoped, tag = 'scoped memory for logistic_regression.1']
    %9 = vsyncpa [#allocation5], 0
    // Predicated region
    $region2: #{logistic_regression.1} parent=1 // pred_check
      _
    $region3: #{logistic_regression.1} parent=1 // pred_check_branch
      %11 = sbr.rel (0) target = $region5
    $region4: #{logistic_regression.1} parent=1 // pred_region
      %13 = vsyncadd [#allocation5], 0
      %s15 = sshll.u32 %s0, 4
      %s16 = int_to_ptr.hbm [resolvable:$true] %s15
      %s17 = sshll.u32 [#allocation4], 4
      %s18 = int_to_ptr.vmem [resolvable:$true] %s17
      %20 = dma.hbm_to_vmem [thread:$0]  %s16, 128, %s18, [#allocation5]
    $region5: #{logistic_regression.1} parent=1 // pred_fallthru
      _
    // Predicated region
    $region6: #{logistic_regression.1} parent=1 // pred_check
      _
    $region7: #{logistic_regression.1} parent=1 // pred_check_branch
      %22 = sbr.rel (0) target = $region9
    $region8: #{logistic_regression.1} parent=1 // pred_region
      _
    $region9: #{logistic_regression.1} parent=1 // pred_fallthru
      _
    // Predicated region
    $region10: #{logistic_regression.1} parent=1 // pred_check
      _
    $region11: #{logistic_regression.1} parent=1 // pred_check_branch
      %24 = sbr.rel (0) target = $region13
    $region12: #{logistic_regression.1} parent=1 // pred_region
      _
    $region13: #{logistic_regression.1} parent=1 // pred_fallthru
      _
    // Predicated region
    $region14: #{logistic_regression.1} parent=1 // pred_check
      _
    $region15: #{logistic_regression.1} parent=1 // pred_check_branch
      %26 = sbr.rel (0) target = $region17
    $region16: #{logistic_regression.1} parent=1 // pred_region
      %28 = dma.done [#allocation5], 128
    $region17: #{logistic_regression.1} parent=1 // pred_fallthru
      _
    %v29 = vld [vmem:[#allocation4] sm:$0xff]
    %v30 = vld [vmem:[%s1] sm:$0x1]
    %v32 = vperm.slane %v30, 0
    %v34 = vmul.f32 %v29, %v32
    %vm35 = vcmask 261120
    %v36 = vsel %vm35, %v34, 0.0
    %37 = vadd.xlane.f32.xlu0 %v36
    %v38 = vpop.xlane.xlu0 %37
    %s39 = sld [smem:[#allocation3]]
    %v40 = vstv %s39
    %v41 = vadd.f32 %v38, %v40
    %v42 = vxor.u32 %v41, 2147483648
    %v43 = vmul.f32 %v42, 1.442695
    %v44 = vpow.pop %v43
    %v45 = vadd.f32 %v44, 1.0
    %v46 = vrcp.pop %v45
    %v47 = vmul.f32 %v45, %v46
    %v48 = vsub.f32 1.0, %v47
    %v49 = vmul.f32 %v46, %v48
    %v50 = vadd.f32 %v46, %v49
    %vm51 = vweird.f32 %v45
    %vm52 = vweird.f32 %v46
    %vm53 = vmor %vm51, %vm52
    %v54 = vsel %vm53, %v46, %v50
    %v55 = vand.u32 2147483647, %v45
    %vm56 = vcmp.eq.f32.partialorder %v55, 8.507059e+37
    %v57 = vand.u32 %v45, 2147483648
    %v58 = vor.u32 1.1754944e-38, %v57
    %v59 = vsel %vm56, %v58, %v54
    %v60 = vmul.f32 1.0, %v59
    %vm61 = vcmask 7168
    %62 = vst.msk [vmem:[%s3] sm:$0xff] %vm61, %v60
    // Predicated region
    $region18: #{logistic_regression.1} parent=1 // pred_check
      _
    $region19: #{logistic_regression.1} parent=1 // pred_check_branch
      %64 = sbr.rel (0) target = $region21
    $region20: #{logistic_regression.1} parent=1 // pred_region
      _
    $region21: #{logistic_regression.1} parent=1 // pred_fallthru
      _
    // Predicated region
    $region22: #{logistic_regression.1} parent=1 // pred_check
      _
    $region23: #{logistic_regression.1} parent=1 // pred_check_branch
      %66 = sbr.rel (0) target = $region25
    $region24: #{logistic_regression.1} parent=1 // pred_region
      _
    $region25: #{logistic_regression.1} parent=1 // pred_fallthru
      _
    %67 = vsyncpa [#allocation5], 1

</llo_original>
